<compile_context>
chip_gen: v6e
topology: v6e:2x2x1
jax: 0.10.0
libtpu: 0.0.40
codegen_flags: <defaults>
</compile_context>

<pallas_src>
import functools

import jax
import jax.numpy as jnp
from jax.experimental import pallas as pl
from jax.experimental.pallas import tpu as pltpu

_LANE = 128      # lane width: last dims padded to a multiple of this
_SUBLANE_BF16 = 16  # bf16 sublane pack: batch tile must be a multiple of this


def _round_up(n: int, m: int) -> int:
    return ((n + m - 1) // m) * m


def _cdiv(a: int, b: int) -> int:
    return -(-a // b)


def _vmem_cap_bytes() -> int:
    """Per-chip VMEM budget: physical capacity minus headroom for Mosaic scratch."""
    cap = None
    try:
        info = pltpu.get_tpu_info()
        cap = getattr(info, "vmem_capacity_bytes", None) or getattr(
            info, "vmem_size_bytes", None
        )
    except Exception:
        cap = None
    if not cap:
        cap = 128 * 1024 * 1024  # conservative default (v5e/v6e physical VMEM)
    return int(max(16 << 20, int(cap) - (16 << 20)))


def _make_dnn_kernel(num_layers: int):
    """Fused MLP kernel.

    Ref order: x(bf16), [w_i(bf16), shift_i(f32)] * num_layers,
               w_out(f32), b_out(f32), out(f32).
    """

    def kernel(*refs):
        x_ref = refs[0]
        o_ref = refs[-1]
        p = refs[1:-1]

        h = x_ref[...]  # bf16 activations (batch tile resident in VMEM)
        for layer in range(num_layers):
            w = p[2 * layer][...]          # (in_pad, hid_pad) bf16, BN scale pre-folded
            shift = p[2 * layer + 1][...]  # (1, hid_pad) f32 = b*scale + beta - mean*scale
            # Linear + folded BatchNorm1d(eval) on the MXU; add + ReLU on the VPU (f32).
            acc = jnp.dot(h, w, preferred_element_type=jnp.float32)
            hf = jnp.maximum(acc + shift, 0.0)
            # Dropout is identity at inference.
            # TODO(synk): training-mode dropout (pltpu.prng_random_bits mask) not emitted.
            if layer + 1 < num_layers:
                h = hf.astype(jnp.bfloat16)
            else:
                h = hf  # keep f32 LHS for the output layer (accuracy hedge)
        w_out = p[2 * num_layers][...]      # f32 output weights
        b_out = p[2 * num_layers + 1][...]  # f32 output bias
        o_ref[...] = (
            jnp.dot(h, w_out, preferred_element_type=jnp.float32) + b_out
        ).astype(o_ref.dtype)

    return kernel


def fold_and_pad_params(params, num_layers: int, lane: int = _LANE):
    """Fold BatchNorm(eval) + bias into [W', shift'] per layer, zero-pad every
    feature dim to a multiple of `lane`, and cast hidden-layer weights to bf16
    (MXU-native). The output-layer weights stay f32 (accuracy hedge, tiny cost).

    Input `params` is the raw flat list:
      [w_i(in,out), b_i(1,out), scale_i(1,out), shift_i(1,out)] * num_layers
      + [w_out(in,out), b_out(1,out)].
    Zero padding is exact: padded input columns are zero, padded weight rows /
    columns are zero, padded shifts are zero, so padded features stay zero
    through ReLU and never contaminate the next layer.
    """
    fused = []
    idx = 0
    for _ in range(num_layers):
        w, b, scale, shift = params[idx : idx + 4]
        idx += 4
        w_f = w * scale                 # fold BN scale into weight columns
        s_f = b * scale + shift         # fold Linear bias through the BN affine
        in_p = _round_up(w.shape[0], lane)
        out_p = _round_up(w.shape[1], lane)
        w_pad = jnp.zeros((in_p, out_p), jnp.float32).at[: w.shape[0], : w.shape[1]].set(w_f)
        s_pad = jnp.zeros((1, out_p), jnp.float32).at[:, : w.shape[1]].set(s_f)
        fused += [w_pad.astype(jnp.bfloat16), s_pad]

    w_out, b_out = params[idx], params[idx + 1]
    in_p = _round_up(w_out.shape[0], lane)
    out_p = _round_up(w_out.shape[1], lane)
    w_pad = jnp.zeros((in_p, out_p), jnp.float32).at[: w_out.shape[0], : w_out.shape[1]].set(w_out)
    b_pad = jnp.zeros((1, out_p), jnp.float32).at[:, : w_out.shape[1]].set(b_out)
    fused += [w_pad, b_pad]   # output layer kept in f32
    return fused


def torch_dnn_forward(x, fused_params, *, num_layers: int, out_dim: int, tile_b: int = 512):
    """Run the fused DNN forward pass.

    Args:
      x: (B, input_dim) float32.
      fused_params: output of `fold_and_pad_params`.
      num_layers: number of hidden layers.
      out_dim: true (unpadded) number of output classes.
      tile_b: max batch tile size (rounded to a multiple of 16; actual tile is
              balanced across grid steps and auto-shrunk to fit VMEM).
    """
    B, in_dim = x.shape
    in_pad = fused_params[0].shape[0]
    out_pad = fused_params[-1].shape[-1]
    param_bytes = sum(int(p.size) * p.dtype.itemsize for p in fused_params)
    feat_pads = [in_pad] + [fused_params[2 * l].shape[1] for l in range(num_layers + 1)]
    max_feat = max(feat_pads)

    # ---- Batch tiling -------------------------------------------------------
    sub = _SUBLANE_BF16
    tile_cap = max(sub, _round_up(tile_b, sub))
    n_tiles = max(1, _cdiv(B, tile_cap))
    # v7x megacore: for reasonably large batches force >= 2 (even) grid steps so
    # dimension_semantics=("parallel",) actually shards across both TensorCores.
    if B >= 256 and (n_tiles % 2 == 1):
        n_tiles += 1
    # Balanced tiles: make the last tile as full as possible (less dead DMA/MXU work).
    tb = _round_up(_cdiv(B, n_tiles), sub)

    # ---- VMEM budget (per-chip cap, activations + single-buffered params) ---
    vmem_cap = _vmem_cap_bytes()

    def vmem_need(tb_):
        act = tb_ * max_feat * (4 + 2)                 # f32 h + its bf16 cast copy
        return (
            2 * tb_ * in_pad * 2                       # double-buffered bf16 x tiles
            + 2 * tb_ * out_pad * 4                    # double-buffered f32 out tiles
            + param_bytes                              # params single-buffered (Buffered(1))
            + act
            + (8 << 20)                                # Mosaic internal scratch headroom
        )

    while vmem_need(tb) > vmem_cap and tb > sub:
        tb = max(sub, _round_up(tb // 2, sub))
    # TODO(synk): if param_bytes alone (+ minimal tile) exceeds the per-chip cap
    # (very wide hidden dims on v7x), stream W_i per layer with emit_pipeline /
    # manual make_async_copy double-buffering instead of keeping all weights resident.

    n_tiles = _cdiv(B, tb)
    b_pad = n_tiles * tb

    # Zero-pad batch rows + input features; ship activations as bf16 (the first
    # matmul consumed bf16 anyway, so this is numerically identical but halves
    # the dominant input DMA stream and its double-buffered VMEM footprint).
    x_p = jnp.zeros((b_pad, in_pad), jnp.bfloat16).at[:B, :in_dim].set(
        x.astype(jnp.bfloat16)
    )

    kernel = _make_dnn_kernel(num_layers)

    # x is tiled over batch; every parameter is broadcast (same block each step,
    # full-array blocks, constant index_map -> single-buffered).
    in_specs = [pl.BlockSpec((tb, in_pad), lambda i: (i, 0))]
    for prm in fused_params:
        in_specs.append(
            pl.BlockSpec(prm.shape, lambda i: (0, 0), pipeline_mode=pl.Buffered(1))
        )
    out_spec = pl.BlockSpec((tb, out_pad), lambda i: (i, 0))

    # Advisory cost estimate (padded shapes) for the surrounding XLA schedule.
    flops = 0
    for layer in range(num_layers + 1):
        w = fused_params[2 * layer]
        flops += 2 * b_pad * w.shape[0] * w.shape[1]
    bytes_accessed = int(x_p.size) * 2 + param_bytes + b_pad * out_pad * 4
    cost = pl.CostEstimate(flops=flops, transcendentals=0, bytes_accessed=bytes_accessed)

    vmem_limit = int(min(vmem_cap, max(16 << 20, vmem_need(tb))))

    out_padded = pl.pallas_call(
        kernel,
        out_shape=jax.ShapeDtypeStruct((b_pad, out_pad), jnp.float32),
        grid_spec=pltpu.PrefetchScalarGridSpec(
            num_scalar_prefetch=0,
            grid=(b_pad // tb,),
            in_specs=in_specs,
            out_specs=out_spec,
        ),
        compiler_params=pltpu.CompilerParams(
            dimension_semantics=("parallel",),   # megacore sharding on v7x
            vmem_limit_bytes=vmem_limit,
        ),
        cost_estimate=cost,
    )(x_p, *fused_params)

    return out_padded[:B, :out_dim]


def init_torch_dnn_params(
    key,
    input_dim: int,
    output_dim: int,
    num_layers: int = 2,
    hidden_dim: int = 256,
    batch_norm: bool = True,
    bn_eps: float = 1e-5,
):
    """Deterministic parameter init mirroring the PyTorch module's shapes.

    Linear weights use U(-1/sqrt(fan_in), 1/sqrt(fan_in)) like torch defaults.
    BatchNorm1d (eval) running stats + affine are expressed as scale/shift.
    Returns the raw flat param list consumed by `fold_and_pad_params` and
    `torch_dnn_reference`.
    """
    params = []
    in_dim = input_dim
    for _ in range(num_layers):
        key, kw, kb, kg, kbe, km, kv = jax.random.split(key, 7)
        bound = 1.0 / jnp.sqrt(in_dim)
        w = jax.random.uniform(kw, (in_dim, hidden_dim), jnp.float32, -bound, bound)
        b = jax.random.uniform(kb, (1, hidden_dim), jnp.float32, -bound, bound)
        if batch_norm:
            gamma = 1.0 + 0.1 * jax.random.normal(kg, (1, hidden_dim), jnp.float32)
            beta = 0.1 * jax.random.normal(kbe, (1, hidden_dim), jnp.float32)
            run_mean = 0.1 * jax.random.normal(km, (1, hidden_dim), jnp.float32)
            run_var = jnp.abs(
                1.0 + 0.1 * jax.random.normal(kv, (1, hidden_dim), jnp.float32)
            )
            scale = gamma / jnp.sqrt(run_var + bn_eps)
            shift = beta - run_mean * scale
        else:
            scale = jnp.ones((1, hidden_dim), jnp.float32)
            shift = jnp.zeros((1, hidden_dim), jnp.float32)
        params += [w, b, scale, shift]
        in_dim = hidden_dim

    key, kw, kb = jax.random.split(key, 3)
    bound = 1.0 / jnp.sqrt(in_dim)
    w_out = jax.random.uniform(kw, (in_dim, output_dim), jnp.float32, -bound, bound)
    b_out = jax.random.uniform(kb, (1, output_dim), jnp.float32, -bound, bound)
    params += [w_out, b_out]
    return params


def torch_dnn_reference(x, params, num_layers):
    """Pure-JAX f32 reference for correctness checking (raw params)."""
    h = x
    idx = 0
    for _ in range(num_layers):
        w, b, scale, shift = params[idx : idx + 4]
        idx += 4
        h = jnp.maximum((h @ w + b) * scale + shift, 0.0)
    w_out, b_out = params[idx], params[idx + 1]
    return h @ w_out + b_out


if __name__ == "__main__":
    # Small, MLP-consistent shapes: batch=16 frames, 32-dim features,
    # hidden_dim=32, output_dim=16 posterior classes, 2 hidden layers.
    B, INPUT_DIM, HIDDEN_DIM, OUTPUT_DIM, NUM_LAYERS = 16, 32, 32, 16, 2

    key = jax.random.PRNGKey(0)
    key, kx = jax.random.split(key)
    x = jax.random.normal(kx, (B, INPUT_DIM), jnp.float32)

    params = init_torch_dnn_params(
        key,
        input_dim=INPUT_DIM,
        output_dim=OUTPUT_DIM,
        num_layers=NUM_LAYERS,
        hidden_dim=HIDDEN_DIM,
        batch_norm=True,
    )

    # Fold BN + bias, pad to lane multiples, cast hidden weights to bf16 (done
    # once, outside jit, so the kernel only sees the fused/padded params).
    fused = fold_and_pad_params(params, NUM_LAYERS)

    fwd = jax.jit(
        functools.partial(
            torch_dnn_forward, num_layers=NUM_LAYERS, out_dim=OUTPUT_DIM, tile_b=512
        )
    )
    out = fwd(x, fused)
    jax.block_until_ready(out)

    ref = torch_dnn_reference(x, params, NUM_LAYERS)
    assert out.shape == (B, OUTPUT_DIM)
    # bf16 inputs/hidden matmuls (f32 accumulation, f32 output layer) ->
    # looser tolerance than the pure-f32 path.
    assert jnp.allclose(out, ref, atol=5e-2, rtol=5e-2), float(
        jnp.max(jnp.abs(out - ref))
    )

    print("KERNEL_OK")
</pallas_src>

<mosaic_0001>
module attributes {stable_mosaic.version = 11 : i64} {
  func.func @kernel(%arg0: i32, %arg1: memref<16x128xbf16, #tpu.memory_space<vmem>>, %arg2: memref<128x128xbf16, #tpu.memory_space<vmem>>, %arg3: memref<1x128xf32, #tpu.memory_space<vmem>>, %arg4: memref<128x128xbf16, #tpu.memory_space<vmem>>, %arg5: memref<1x128xf32, #tpu.memory_space<vmem>>, %arg6: memref<128x128xf32, #tpu.memory_space<vmem>>, %arg7: memref<1x128xf32, #tpu.memory_space<vmem>>, %arg8: memref<16x128xf32, #tpu.memory_space<vmem>>) attributes {dimension_semantics = [#tpu.dimension_semantics<parallel>], iteration_bounds = array<i64: 1>, scalar_prefetch = 0 : i64, scratch_operands = 0 : i64, tpu.core_type = #tpu.core_type<tc>, window_params = [{transform_indices = @transform_0, window_bounds = array<i64: 16, 128>}, {pipeline_mode = #tpu.pipeline_mode<synchronous>, transform_indices = @transform_1, window_bounds = array<i64: 128, 128>}, {pipeline_mode = #tpu.pipeline_mode<synchronous>, transform_indices = @transform_2, window_bounds = array<i64: 1, 128>}, {pipeline_mode = #tpu.pipeline_mode<synchronous>, transform_indices = @transform_3, window_bounds = array<i64: 128, 128>}, {pipeline_mode = #tpu.pipeline_mode<synchronous>, transform_indices = @transform_4, window_bounds = array<i64: 1, 128>}, {pipeline_mode = #tpu.pipeline_mode<synchronous>, transform_indices = @transform_5, window_bounds = array<i64: 128, 128>}, {pipeline_mode = #tpu.pipeline_mode<synchronous>, transform_indices = @transform_6, window_bounds = array<i64: 1, 128>}, {transform_indices = @transform_7, window_bounds = array<i64: 16, 128>}]} {
    %c0 = arith.constant 0 : index
    %c0_0 = arith.constant 0 : index
    %0 = vector.load %arg1[%c0, %c0_0] : memref<16x128xbf16, #tpu.memory_space<vmem>>, vector<16x128xbf16>
    %c0_1 = arith.constant 0 : index
    %c0_2 = arith.constant 0 : index
    %1 = vector.load %arg2[%c0_1, %c0_2] : memref<128x128xbf16, #tpu.memory_space<vmem>>, vector<128x128xbf16>
    %c0_3 = arith.constant 0 : index
    %c0_4 = arith.constant 0 : index
    %2 = vector.load %arg3[%c0_3, %c0_4] : memref<1x128xf32, #tpu.memory_space<vmem>>, vector<1x128xf32>
    %cst = arith.constant dense<0.000000e+00> : vector<16x128xf32>
    %3 = tpu.matmul %0, %1, %cst {dimension_numbers = #tpu.dot_dimension_numbers<[1], [0], [0], [1], [0, 0, 1, 1], [], []>} : vector<16x128xbf16>, vector<128x128xbf16>, vector<16x128xf32> -> vector<16x128xf32>
    %4 = vector.broadcast %2 : vector<1x128xf32> to vector<16x128xf32>
    %5 = arith.addf %3, %4 : vector<16x128xf32>
    %cst_5 = arith.constant 0.000000e+00 : f32
    %6 = vector.broadcast %cst_5 : f32 to vector<16x128xf32>
    %7 = arith.maximumf %5, %6 : vector<16x128xf32>
    %8 = arith.truncf %7 : vector<16x128xf32> to vector<16x128xbf16>
    %c0_6 = arith.constant 0 : index
    %c0_7 = arith.constant 0 : index
    %9 = vector.load %arg4[%c0_6, %c0_7] : memref<128x128xbf16, #tpu.memory_space<vmem>>, vector<128x128xbf16>
    %c0_8 = arith.constant 0 : index
    %c0_9 = arith.constant 0 : index
    %10 = vector.load %arg5[%c0_8, %c0_9] : memref<1x128xf32, #tpu.memory_space<vmem>>, vector<1x128xf32>
    %cst_10 = arith.constant dense<0.000000e+00> : vector<16x128xf32>
    %11 = tpu.matmul %8, %9, %cst_10 {dimension_numbers = #tpu.dot_dimension_numbers<[1], [0], [0], [1], [0, 0, 1, 1], [], []>} : vector<16x128xbf16>, vector<128x128xbf16>, vector<16x128xf32> -> vector<16x128xf32>
    %12 = vector.broadcast %10 : vector<1x128xf32> to vector<16x128xf32>
    %13 = arith.addf %11, %12 : vector<16x128xf32>
    %cst_11 = arith.constant 0.000000e+00 : f32
    %14 = vector.broadcast %cst_11 : f32 to vector<16x128xf32>
    %15 = arith.maximumf %13, %14 : vector<16x128xf32>
    %c0_12 = arith.constant 0 : index
    %c0_13 = arith.constant 0 : index
    %16 = vector.load %arg6[%c0_12, %c0_13] : memref<128x128xf32, #tpu.memory_space<vmem>>, vector<128x128xf32>
    %c0_14 = arith.constant 0 : index
    %c0_15 = arith.constant 0 : index
    %17 = vector.load %arg7[%c0_14, %c0_15] : memref<1x128xf32, #tpu.memory_space<vmem>>, vector<1x128xf32>
    %cst_16 = arith.constant dense<0.000000e+00> : vector<16x128xf32>
    %18 = tpu.matmul %15, %16, %cst_16 {dimension_numbers = #tpu.dot_dimension_numbers<[1], [0], [0], [1], [0, 0, 1, 1], [], []>} : vector<16x128xf32>, vector<128x128xf32>, vector<16x128xf32> -> vector<16x128xf32>
    %19 = vector.broadcast %17 : vector<1x128xf32> to vector<16x128xf32>
    %20 = arith.addf %18, %19 : vector<16x128xf32>
    %c0_17 = arith.constant 0 : index
    %c0_18 = arith.constant 0 : index
    %21 = vector.load %arg8[%c0_17, %c0_18] : memref<16x128xf32, #tpu.memory_space<vmem>>, vector<16x128xf32>
    tpu.vector_store %arg8[%c0_17, %c0_18], %20 {strides = array<i32>} : memref<16x128xf32, #tpu.memory_space<vmem>>, vector<16x128xf32>,
    return
  }
  func.func @transform_0(%arg0: i32) -> (i32, i32) {
    %c0_i32 = arith.constant 0 : i32
    %c0_i32_0 = arith.constant 0 : i32
    return %arg0, %c0_i32 : i32, i32
  }
  func.func @transform_1(%arg0: i32) -> (i32, i32) {
    %c0_i32 = arith.constant 0 : i32
    %c0_i32_0 = arith.constant 0 : i32
    %c0_i32_1 = arith.constant 0 : i32
    return %c0_i32, %c0_i32_0 : i32, i32
  }
  func.func @transform_2(%arg0: i32) -> (i32, i32) {
    %c0_i32 = arith.constant 0 : i32
    %c0_i32_0 = arith.constant 0 : i32
    %c0_i32_1 = arith.constant 0 : i32
    return %c0_i32, %c0_i32_0 : i32, i32
  }
  func.func @transform_3(%arg0: i32) -> (i32, i32) {
    %c0_i32 = arith.constant 0 : i32
    %c0_i32_0 = arith.constant 0 : i32
    %c0_i32_1 = arith.constant 0 : i32
    return %c0_i32, %c0_i32_0 : i32, i32
  }
  func.func @transform_4(%arg0: i32) -> (i32, i32) {
    %c0_i32 = arith.constant 0 : i32
    %c0_i32_0 = arith.constant 0 : i32
    %c0_i32_1 = arith.constant 0 : i32
    return %c0_i32, %c0_i32_0 : i32, i32
  }
  func.func @transform_5(%arg0: i32) -> (i32, i32) {
    %c0_i32 = arith.constant 0 : i32
    %c0_i32_0 = arith.constant 0 : i32
    %c0_i32_1 = arith.constant 0 : i32
    return %c0_i32, %c0_i32_0 : i32, i32
  }
  func.func @transform_6(%arg0: i32) -> (i32, i32) {
    %c0_i32 = arith.constant 0 : i32
    %c0_i32_0 = arith.constant 0 : i32
    %c0_i32_1 = arith.constant 0 : i32
    return %c0_i32, %c0_i32_0 : i32, i32
  }
  func.func @transform_7(%arg0: i32) -> (i32, i32) {
    %c0_i32 = arith.constant 0 : i32
    %c0_i32_0 = arith.constant 0 : i32
    return %arg0, %c0_i32 : i32, i32
  }
}

</mosaic_0001>

<llo_original>
// kernel: torch_dnn_forward.1
$region0: #{torch_dnn_forward.1}
  #allocation0 [shape = 'u32[]', space=smem, size = 0x4, offset = 0x4, fixed_abs, tag = 'smem constant byte address 0x4 - core index']
  #allocation1 [shape = 'u32[144,128]{1,0:T(1,128)}', space=vmem, size = 0x12000, scoped, tag = 'internal scratch']
  %s0 = inlined_call_operand.vmem [shape: bf16[16,128], index: 0, kind: input, shape index: {}]
  %s1 = inlined_call_operand.hbm [shape: bf16[128,128], index: 1, kind: input, shape index: {}]
  %s2 = inlined_call_operand.vmem [shape: f32[1,128], index: 2, kind: input, shape index: {}]
  %s3 = inlined_call_operand.hbm [shape: bf16[128,128], index: 3, kind: input, shape index: {}]
  %s4 = inlined_call_operand.vmem [shape: f32[1,128], index: 4, kind: input, shape index: {}]
  %s5 = inlined_call_operand.hbm [shape: f32[128,128], index: 5, kind: input, shape index: {}]
  %s6 = inlined_call_operand.vmem [shape: f32[1,128], index: 6, kind: input, shape index: {}]
  %s7 = inlined_call_operand.hbm [shape: f32[16,128], index: 7, kind: output, shape index: {}]
  %s8 = sld [smem:[#allocation0]]
  $region50: #{torch_dnn_forward.1} parent=0
    _
  %s10 = ssub.s32 1, %s8
  %s11 = scalar_select 0, %s10, %s8
  $region1: #{torch_dnn_forward.1} parent=0
    #allocation2 [shape = 'u8[32768]{0}', space=vmem, size = 0x8000, scoped, tag = 'input window, operand 1, single buffered']
    #allocation3 [shape = 's32[1]{0}', space=sflag, size = 0x4, scoped, tag = 'scoped memory for torch_dnn_forward.1']
    #allocation4 [shape = 's32[1]{0}', space=sflag, size = 0x4, scoped, tag = 'scoped memory for torch_dnn_forward.1']
    #allocation5 [shape = 'u8[32768]{0}', space=vmem, size = 0x8000, scoped, tag = 'input window, operand 3, single buffered']
    #allocation6 [shape = 's32[1]{0}', space=sflag, size = 0x4, scoped, tag = 'scoped memory for torch_dnn_forward.1']
    #allocation7 [shape = 'u8[65536]{0}', space=vmem, size = 0x10000, scoped, tag = 'input window, operand 5, single buffered']
    #allocation8 [shape = 'u8[8192]{0}', space=vmem, size = 0x2000, scoped, tag = 'output window, operand 0, single buffered']
    %12 = vsyncpa [#allocation3], 0
    %13 = vsyncpa [#allocation6], 0
    %14 = vsyncpa [#allocation4], 0
    // Predicated region
    $region2: #{torch_dnn_forward.1} parent=1 // pred_check
      _
    $region3: #{torch_dnn_forward.1} parent=1 // pred_check_branch
      %16 = sbr.rel (0) target = $region5
    $region4: #{torch_dnn_forward.1} parent=1 // pred_region
      _
    $region5: #{torch_dnn_forward.1} parent=1 // pred_fallthru
      _
    // Predicated region
    $region6: #{torch_dnn_forward.1} parent=1 // pred_check
      _
    $region7: #{torch_dnn_forward.1} parent=1 // pred_check_branch
      %18 = sbr.rel (0) target = $region9
    $region8: #{torch_dnn_forward.1} parent=1 // pred_region
      %s20 = ssub.s32 1024, 1024
      %21 = vsyncadd [#allocation3], %s20
      %s22 = sshll.u32 [#allocation2], 4
      %s23 = int_to_ptr.vmem [resolvable:$true] %s22
      %28 = dma.hbm_to_vmem [thread:$0]  %s1, 1024, %s23, [#allocation3], 64, 64, 4
    $region9: #{torch_dnn_forward.1} parent=1 // pred_fallthru
      _
    // Predicated region
    $region10: #{torch_dnn_forward.1} parent=1 // pred_check
      _
    $region11: #{torch_dnn_forward.1} parent=1 // pred_check_branch
      %30 = sbr.rel (0) target = $region13
    $region12: #{torch_dnn_forward.1} parent=1 // pred_region
      _
    $region13: #{torch_dnn_forward.1} parent=1 // pred_fallthru
      _
    // Predicated region
    $region14: #{torch_dnn_forward.1} parent=1 // pred_check
      _
    $region15: #{torch_dnn_forward.1} parent=1 // pred_check_branch
      %32 = sbr.rel (0) target = $region17
    $region16: #{torch_dnn_forward.1} parent=1 // pred_region
      %s34 = ssub.s32 1024, 1024
      %35 = vsyncadd [#allocation6], %s34
      %s36 = sshll.u32 [#allocation5], 4
      %s37 = int_to_ptr.vmem [resolvable:$true] %s36
      %42 = dma.hbm_to_vmem [thread:$0]  %s3, 1024, %s37, [#allocation6], 64, 64, 4
    $region17: #{torch_dnn_forward.1} parent=1 // pred_fallthru
      _
    // Predicated region
    $region18: #{torch_dnn_forward.1} parent=1 // pred_check
      _
    $region19: #{torch_dnn_forward.1} parent=1 // pred_check_branch
      %44 = sbr.rel (0) target = $region21
    $region20: #{torch_dnn_forward.1} parent=1 // pred_region
      _
    $region21: #{torch_dnn_forward.1} parent=1 // pred_fallthru
      _
    // Predicated region
    $region22: #{torch_dnn_forward.1} parent=1 // pred_check
      _
    $region23: #{torch_dnn_forward.1} parent=1 // pred_check_branch
      %46 = sbr.rel (0) target = $region25
    $region24: #{torch_dnn_forward.1} parent=1 // pred_region
      %s48 = ssub.s32 2048, 2048
      %49 = vsyncadd [#allocation6], %s48
      %s50 = sshll.u32 [#allocation7], 4
      %s51 = int_to_ptr.vmem [resolvable:$true] %s50
      %56 = dma.hbm_to_vmem [thread:$0]  %s5, 2048, %s51, [#allocation6], 128, 128, 8
    $region25: #{torch_dnn_forward.1} parent=1 // pred_fallthru
      _
    // Predicated region
    $region26: #{torch_dnn_forward.1} parent=1 // pred_check
      _
    $region27: #{torch_dnn_forward.1} parent=1 // pred_check_branch
      %58 = sbr.rel (0) target = $region29
    $region28: #{torch_dnn_forward.1} parent=1 // pred_region
      _
    $region29: #{torch_dnn_forward.1} parent=1 // pred_fallthru
      _
    // Predicated region
    $region30: #{torch_dnn_forward.1} parent=1 // pred_check
      _
    $region31: #{torch_dnn_forward.1} parent=1 // pred_check_branch
      %60 = sbr.rel (0) target = $region33
    $region32: #{torch_dnn_forward.1} parent=1 // pred_region
      %61 = dma.done [#allocation3], 1024
    $region33: #{torch_dnn_forward.1} parent=1 // pred_fallthru
      _
    // Predicated region
    $region34: #{torch_dnn_forward.1} parent=1 // pred_check
      _
    $region35: #{torch_dnn_forward.1} parent=1 // pred_check_branch
      %63 = sbr.rel (0) target = $region37
    $region36: #{torch_dnn_forward.1} parent=1 // pred_region
      %64 = dma.done [#allocation6], 1024
    $region37: #{torch_dnn_forward.1} parent=1 // pred_fallthru
      _
    // Predicated region
    $region38: #{torch_dnn_forward.1} parent=1 // pred_check
      _
    $region39: #{torch_dnn_forward.1} parent=1 // pred_check_branch
      %66 = sbr.rel (0) target = $region41
    $region40: #{torch_dnn_forward.1} parent=1 // pred_region
      %67 = dma.done [#allocation6], 2048
    $region41: #{torch_dnn_forward.1} parent=1 // pred_fallthru
      _
    %v69 = vld [vmem:[%s0] sm:$0xf]
    %v70 = vld [vmem:[%s0 + $0x4] sm:$0xf]
    %v71 = vld [vmem:[#allocation2] sm:$0xf]
    %v72 = vld [vmem:[#allocation2 + $0x4] sm:$0xf]
    %v73 = vld [vmem:[#allocation2 + $0x8] sm:$0xf]
    %v74 = vld [vmem:[#allocation2 + $0xc] sm:$0xf]
    %v75 = vld [vmem:[#allocation2 + $0x10] sm:$0xf]
    %v76 = vld [vmem:[#allocation2 + $0x14] sm:$0xf]
    %v77 = vld [vmem:[#allocation2 + $0x18] sm:$0xf]
    %v78 = vld [vmem:[#allocation2 + $0x1c] sm:$0xf]
    %v79 = vld [vmem:[#allocation2 + $0x20] sm:$0xf]
    %v80 = vld [vmem:[#allocation2 + $0x24] sm:$0xf]
    %v81 = vld [vmem:[#allocation2 + $0x28] sm:$0xf]
    %v82 = vld [vmem:[#allocation2 + $0x2c] sm:$0xf]
    %v83 = vld [vmem:[#allocation2 + $0x30] sm:$0xf]
    %v84 = vld [vmem:[#allocation2 + $0x34] sm:$0xf]
    %v85 = vld [vmem:[#allocation2 + $0x38] sm:$0xf]
    %v86 = vld [vmem:[#allocation2 + $0x3c] sm:$0xf]
    %v87 = vld [vmem:[%s2] sm:$0x1]
    %v89 = vlaneseq
    %v90 = vshrl.u32 %v89, 7
    %v91 = vsub.s32 0, %v90
    %v92 = vrot.slane %v87, %v91
    %v96 = vunpack.c.l.b16 %v69
    %v97 = vunpack.c.l.b16 %v70
    %v98 = vpack.c.b16 %v97, %v96
    %v116 = vunpack.c.l.b16 %v71
    %v117 = vunpack.c.l.b16 %v72
    %v118 = vunpack.c.l.b16 %v73
    %v119 = vunpack.c.l.b16 %v74
    %v120 = vunpack.c.l.b16 %v75
    %v121 = vunpack.c.l.b16 %v76
    %v122 = vunpack.c.l.b16 %v77
    %v123 = vunpack.c.l.b16 %v78
    %v124 = vunpack.c.l.b16 %v79
    %v125 = vunpack.c.l.b16 %v80
    %v126 = vunpack.c.l.b16 %v81
    %v127 = vunpack.c.l.b16 %v82
    %v128 = vunpack.c.l.b16 %v83
    %v129 = vunpack.c.l.b16 %v84
    %v130 = vunpack.c.l.b16 %v85
    %v131 = vunpack.c.l.b16 %v86
    %v132 = vpack.c.b16 %v117, %v116
    %v133 = vpack.c.b16 %v119, %v118
    %v134 = vpack.c.b16 %v121, %v120
    %v135 = vpack.c.b16 %v123, %v122
    %v136 = vpack.c.b16 %v125, %v124
    %v137 = vpack.c.b16 %v127, %v126
    %v138 = vpack.c.b16 %v129, %v128
    %v139 = vpack.c.b16 %v131, %v130
    %148 = vmatprep.subr.bf16.mxu0 0
    %149 = vmatpush1.bf16.msra.mxu0 %v139
    %150 = vmatprep.subr.bf16.mxu0 0
    %151 = vmatpush1.bf16.msra.mxu0 %v138
    %152 = vmatprep.subr.bf16.mxu0 0
    %153 = vmatpush1.bf16.msra.mxu0 %v137
    %154 = vmatprep.subr.bf16.mxu0 0
    %155 = vmatpush1.bf16.msra.mxu0 %v136
    %156 = vmatprep.subr.bf16.mxu0 0
    %157 = vmatpush1.bf16.msra.mxu0 %v135
    %158 = vmatprep.subr.bf16.mxu0 0
    %159 = vmatpush1.bf16.msra.mxu0 %v134
    %160 = vmatprep.subr.bf16.mxu0 0
    %161 = vmatpush1.bf16.msra.mxu0 %v133
    %162 = vmatprep.subr.bf16.mxu0 0
    %163 = vmatpush1.bf16.msra.mxu0 %v132
    %164 = vmatprep.subr.bf16.mxu0 0
    %165 = vmatpush2.bf16.msra.mxu0 0
    %166 = vmatprep.subr.bf16.mxu0 0
    %167 = vmatpush2.bf16.msra.mxu0 0
    %168 = vmatprep.subr.bf16.mxu0 0
    %169 = vmatpush2.bf16.msra.mxu0 0
    %170 = vmatprep.subr.bf16.mxu0 0
    %171 = vmatpush2.bf16.msra.mxu0 0
    %172 = vmatprep.subr.bf16.mxu0 0
    %173 = vmatpush2.bf16.msra.mxu0 0
    %174 = vmatprep.subr.bf16.mxu0 0
    %175 = vmatpush2.bf16.msra.mxu0 0
    %176 = vmatprep.subr.bf16.mxu0 0
    %177 = vmatpush2.bf16.msra.mxu0 0
    %178 = vmatprep.subr.bf16.mxu0 0
    %179 = vmatpush2.bf16.msra.mxu0 0
    %180 = vmatprep.mubr.bf16.mxu0 0
    %181 = vmatmul.mubr.bf16.gmra.mxu0 %v98
    %v182 = vpop.f32.mrf.mxu0
    %v183 = vadd.f32 %v92, %v182
    %v184 = vpop.f32.mrf.mxu0
    %v185 = vpop.f32.mrf.mxu0
    %v186 = vadd.f32 %v92, %v185
    %v187 = vpop.f32.mrf.mxu0
    %188 = vdwg.mxu0
    %v189 = vmax.f32 %v183, 0.0
    %v190 = vmax.f32 %v186, 0.0
    %v191 = vpack.c.bf16 %v190, %v189
    %v192 = vld [vmem:[#allocation5] sm:$0xf]
    %v193 = vld [vmem:[#allocation5 + $0x4] sm:$0xf]
    %v194 = vld [vmem:[#allocation5 + $0x8] sm:$0xf]
    %v195 = vld [vmem:[#allocation5 + $0xc] sm:$0xf]
    %v196 = vld [vmem:[#allocation5 + $0x10] sm:$0xf]
    %v197 = vld [vmem:[#allocation5 + $0x14] sm:$0xf]
    %v198 = vld [vmem:[#allocation5 + $0x18] sm:$0xf]
    %v199 = vld [vmem:[#allocation5 + $0x1c] sm:$0xf]
    %v200 = vld [vmem:[#allocation5 + $0x20] sm:$0xf]
    %v201 = vld [vmem:[#allocation5 + $0x24] sm:$0xf]
    %v202 = vld [vmem:[#allocation5 + $0x28] sm:$0xf]
    %v203 = vld [vmem:[#allocation5 + $0x2c] sm:$0xf]
    %v204 = vld [vmem:[#allocation5 + $0x30] sm:$0xf]
    %v205 = vld [vmem:[#allocation5 + $0x34] sm:$0xf]
    %v206 = vld [vmem:[#allocation5 + $0x38] sm:$0xf]
    %v207 = vld [vmem:[#allocation5 + $0x3c] sm:$0xf]
    %v208 = vld [vmem:[%s4] sm:$0x1]
    %v210 = vlaneseq
    %v211 = vshrl.u32 %v210, 7
    %v212 = vsub.s32 0, %v211
    %v213 = vrot.slane %v208, %v212
    %v231 = vunpack.c.l.b16 %v192
    %v232 = vunpack.c.l.b16 %v193
    %v233 = vunpack.c.l.b16 %v194
    %v234 = vunpack.c.l.b16 %v195
    %v235 = vunpack.c.l.b16 %v196
    %v236 = vunpack.c.l.b16 %v197
    %v237 = vunpack.c.l.b16 %v198
    %v238 = vunpack.c.l.b16 %v199
    %v239 = vunpack.c.l.b16 %v200
    %v240 = vunpack.c.l.b16 %v201
    %v241 = vunpack.c.l.b16 %v202
    %v242 = vunpack.c.l.b16 %v203
    %v243 = vunpack.c.l.b16 %v204
    %v244 = vunpack.c.l.b16 %v205
    %v245 = vunpack.c.l.b16 %v206
    %v246 = vunpack.c.l.b16 %v207
    %v247 = vpack.c.b16 %v232, %v231
    %v248 = vpack.c.b16 %v234, %v233
    %v249 = vpack.c.b16 %v236, %v235
    %v250 = vpack.c.b16 %v238, %v237
    %v251 = vpack.c.b16 %v240, %v239
    %v252 = vpack.c.b16 %v242, %v241
    %v253 = vpack.c.b16 %v244, %v243
    %v254 = vpack.c.b16 %v246, %v245
    %263 = vmatprep.subr.bf16.mxu0 0
    %264 = vmatpush1.bf16.msra.mxu0 %v254
    %265 = vmatprep.subr.bf16.mxu0 0
    %266 = vmatpush1.bf16.msra.mxu0 %v253
    %267 = vmatprep.subr.bf16.mxu0 0
    %268 = vmatpush1.bf16.msra.mxu0 %v252
    %269 = vmatprep.subr.bf16.mxu0 0
    %270 = vmatpush1.bf16.msra.mxu0 %v251
    %271 = vmatprep.subr.bf16.mxu0 0
    %272 = vmatpush1.bf16.msra.mxu0 %v250
    %273 = vmatprep.subr.bf16.mxu0 0
    %274 = vmatpush1.bf16.msra.mxu0 %v249
    %275 = vmatprep.subr.bf16.mxu0 0
    %276 = vmatpush1.bf16.msra.mxu0 %v248
    %277 = vmatprep.subr.bf16.mxu0 0
    %278 = vmatpush1.bf16.msra.mxu0 %v247
    %279 = vmatprep.subr.bf16.mxu0 0
    %280 = vmatpush2.bf16.msra.mxu0 0
    %281 = vmatprep.subr.bf16.mxu0 0
    %282 = vmatpush2.bf16.msra.mxu0 0
    %283 = vmatprep.subr.bf16.mxu0 0
    %284 = vmatpush2.bf16.msra.mxu0 0
    %285 = vmatprep.subr.bf16.mxu0 0
    %286 = vmatpush2.bf16.msra.mxu0 0
    %287 = vmatprep.subr.bf16.mxu0 0
    %288 = vmatpush2.bf16.msra.mxu0 0
    %289 = vmatprep.subr.bf16.mxu0 0
    %290 = vmatpush2.bf16.msra.mxu0 0
    %291 = vmatprep.subr.bf16.mxu0 0
    %292 = vmatpush2.bf16.msra.mxu0 0
    %293 = vmatprep.subr.bf16.mxu0 0
    %294 = vmatpush2.bf16.msra.mxu0 0
    %295 = vmatprep.mubr.bf16.mxu0 0
    %296 = vmatmul.mubr.bf16.gmra.mxu0 %v191
    %v297 = vpop.f32.mrf.mxu0
    %v298 = vadd.f32 %v213, %v297
    %v299 = vpop.f32.mrf.mxu0
    %v300 = vpop.f32.mrf.mxu0
    %v301 = vadd.f32 %v213, %v300
    %v302 = vpop.f32.mrf.mxu0
    %303 = vdwg.mxu0
    %v304 = vmax.f32 %v298, 0.0
    %v305 = vmax.f32 %v301, 0.0
    %v306 = vld [vmem:[#allocation7] sm:$0xff]
    %v307 = vld [vmem:[#allocation7 + $0x8] sm:$0xff]
    %v308 = vld [vmem:[#allocation7 + $0x10] sm:$0xff]
    %v309 = vld [vmem:[#allocation7 + $0x18] sm:$0xff]
    %v310 = vld [vmem:[#allocation7 + $0x20] sm:$0xff]
    %v311 = vld [vmem:[#allocation7 + $0x28] sm:$0xff]
    %v312 = vld [vmem:[#allocation7 + $0x30] sm:$0xff]
    %v313 = vld [vmem:[#allocation7 + $0x38] sm:$0xff]
    %v314 = vld [vmem:[#allocation7 + $0x40] sm:$0xff]
    %v315 = vld [vmem:[#allocation7 + $0x48] sm:$0xff]
    %v316 = vld [vmem:[#allocation7 + $0x50] sm:$0xff]
    %v317 = vld [vmem:[#allocation7 + $0x58] sm:$0xff]
    %v318 = vld [vmem:[#allocation7 + $0x60] sm:$0xff]
    %v319 = vld [vmem:[#allocation7 + $0x68] sm:$0xff]
    %v320 = vld [vmem:[#allocation7 + $0x70] sm:$0xff]
    %v321 = vld [vmem:[#allocation7 + $0x78] sm:$0xff]
    %v322 = vld [vmem:[%s6] sm:$0x1]
    %v324 = vlaneseq
    %v325 = vshrl.u32 %v324, 7
    %v326 = vsub.s32 0, %v325
    %v327 = vrot.slane %v322, %v326
    %329 = vmatprep.subr.mxu0 0.0
    %330 = vmatpush1.msra.mxu0 %v321
    %331 = vmatprep.subr.mxu0 0.0
    %332 = vmatpush1.msra.mxu0 %v320
    %333 = vmatprep.subr.mxu0 0.0
    %334 = vmatpush1.msra.mxu0 %v319
    %335 = vmatprep.subr.mxu0 0.0
    %336 = vmatpush1.msra.mxu0 %v318
    %337 = vmatprep.subr.mxu0 0.0
    %338 = vmatpush1.msra.mxu0 %v317
    %339 = vmatprep.subr.mxu0 0.0
    %340 = vmatpush1.msra.mxu0 %v316
    %341 = vmatprep.subr.mxu0 0.0
    %342 = vmatpush1.msra.mxu0 %v315
    %343 = vmatprep.subr.mxu0 0.0
    %344 = vmatpush1.msra.mxu0 %v314
    %345 = vmatprep.subr.mxu0 0.0
    %346 = vmatpush1.msra.mxu0 %v313
    %347 = vmatprep.subr.mxu0 0.0
    %348 = vmatpush1.msra.mxu0 %v312
    %349 = vmatprep.subr.mxu0 0.0
    %350 = vmatpush1.msra.mxu0 %v311
    %351 = vmatprep.subr.mxu0 0.0
    %352 = vmatpush1.msra.mxu0 %v310
    %353 = vmatprep.subr.mxu0 0.0
    %354 = vmatpush1.msra.mxu0 %v309
    %355 = vmatprep.subr.mxu0 0.0
    %356 = vmatpush1.msra.mxu0 %v308
    %357 = vmatprep.subr.mxu0 0.0
    %358 = vmatpush1.msra.mxu0 %v307
    %359 = vmatprep.subr.mxu0 0.0
    %360 = vmatpush1.msra.mxu0 %v306
    %361 = vmatprep.subr.mxu0 0.0
    %362 = vmatpush2.msra.mxu0 0.0
    %363 = vmatprep.subr.mxu0 0.0
    %364 = vmatpush2.msra.mxu0 0.0
    %365 = vmatprep.subr.mxu0 0.0
    %366 = vmatpush2.msra.mxu0 0.0
    %367 = vmatprep.subr.mxu0 0.0
    %368 = vmatpush2.msra.mxu0 0.0
    %369 = vmatprep.subr.mxu0 0.0
    %370 = vmatpush2.msra.mxu0 0.0
    %371 = vmatprep.subr.mxu0 0.0
    %372 = vmatpush2.msra.mxu0 0.0
    %373 = vmatprep.subr.mxu0 0.0
    %374 = vmatpush2.msra.mxu0 0.0
    %375 = vmatprep.subr.mxu0 0.0
    %376 = vmatpush2.msra.mxu0 0.0
    %377 = vmatprep.subr.mxu0 0.0
    %378 = vmatpush2.msra.mxu0 0.0
    %379 = vmatprep.subr.mxu0 0.0
    %380 = vmatpush2.msra.mxu0 0.0
    %381 = vmatprep.subr.mxu0 0.0
    %382 = vmatpush2.msra.mxu0 0.0
    %383 = vmatprep.subr.mxu0 0.0
    %384 = vmatpush2.msra.mxu0 0.0
    %385 = vmatprep.subr.mxu0 0.0
    %386 = vmatpush2.msra.mxu0 0.0
    %387 = vmatprep.subr.mxu0 0.0
    %388 = vmatpush2.msra.mxu0 0.0
    %389 = vmatprep.subr.mxu0 0.0
    %390 = vmatpush2.msra.mxu0 0.0
    %391 = vmatprep.subr.mxu0 0.0
    %392 = vmatpush2.msra.mxu0 0.0
    %393 = vmatprep.mubr.f32.mxu0 0.0
    %394 = vmatmul.mubr.f32.gmra.mxu0 %v304
    %v395 = vpop.f32.mrf.mxu0
    %v396 = vadd.f32 %v327, %v395
    %v397 = vpop.f32.mrf.mxu0
    %398 = vmatprep.mubr.f32.mxu0 0.0
    %399 = vmatmul.mubr.f32.gmra.mxu0 %v305
    %v400 = vpop.f32.mrf.mxu0
    %v401 = vadd.f32 %v327, %v400
    %v402 = vpop.f32.mrf.mxu0
    %403 = vdwg.mxu0
    %404 = vst [vmem:[#allocation8] sm:$0xff] %v396
    %405 = vst [vmem:[#allocation8 + $0x8] sm:$0xff] %v401
    // Predicated region
    $region42: #{torch_dnn_forward.1} parent=1 // pred_check
      _
    $region43: #{torch_dnn_forward.1} parent=1 // pred_check_branch
      %407 = sbr.rel (0) target = $region45
    $region44: #{torch_dnn_forward.1} parent=1 // pred_region
      %s409 = ssub.s32 256, 256
      %410 = vsyncadd [#allocation4], %s409
      %s411 = sshll.u32 [#allocation8], 4
      %s412 = int_to_ptr.vmem [resolvable:$true] %s411
      %417 = dma.vmem_to_hbm [thread:$0]  %s412, 256, %s7, [#allocation4], 128, 128, 8
    $region45: #{torch_dnn_forward.1} parent=1 // pred_fallthru
      _
    // Predicated region
    $region46: #{torch_dnn_forward.1} parent=1 // pred_check
      _
    $region47: #{torch_dnn_forward.1} parent=1 // pred_check_branch
      %419 = sbr.rel (0) target = $region49
    $region48: #{torch_dnn_forward.1} parent=1 // pred_region
      %420 = dma.done [#allocation4], 256
    $region49: #{torch_dnn_forward.1} parent=1 // pred_fallthru
      _
    %421 = vsyncpa [#allocation3], 1
    %422 = vsyncpa [#allocation6], 1
    %423 = vsyncpa [#allocation4], 1

</llo_original>
